<compile_context>
chip_gen: v6e
topology: v6e:2x2x1
jax: 0.10.0
libtpu: 0.0.40
codegen_flags: <defaults>
</compile_context>

<pallas_src>
import functools
import math

import jax
import jax.numpy as jnp
from jax.experimental import pallas as pl
from jax.experimental.pallas import tpu as pltpu


def _round_up(n, m):
    return ((n + m - 1) // m) * m


def _sigmoid_f32(x):
    # Single EUP tanh instead of exp + divide.
    return 0.5 * jnp.tanh(0.5 * x) + 0.5


def _vmem_limit_bytes():
    # Raise the scoped-VMEM limit (defaults: 16 MiB v5e / 32 MiB v6e-v7x) so
    # resident weights + double-buffered activation tiles fit without shrinking
    # the batch tile. Leave headroom below the physical capacity.
    try:
        cap = pltpu.get_tpu_info().vmem_capacity_bytes
    except Exception:
        cap = 64 * 1024 * 1024  # conservative fallback (v7x physical = 64 MiB)
    return max(int(cap * 3 // 4), 32 * 1024 * 1024)


# ----------------------------- Pallas kernel ---------------------------------

def _mlp_encoder_kernel(user_ref, item_ref,
                        w_ut1_ref, b_ut1_ref, w_ut2_ref, b_ut2_ref,
                        w_i1_ref, b_i1_ref, w_i2_ref, b_i2_ref,
                        w_i3_ref, b_i3_ref,
                        ut_out_ref, item_out_ref,
                        *, embed_dim, know_num):
    f32 = jnp.float32
    bf16 = jnp.bfloat16

    # ---------------- user_enc + time_enc (shared input, merged matmuls) -----
    # Layer 1: user @ [W_u1 | W_t1] -> first embed lanes = user path (sigmoid),
    #                                  last embed lanes  = time path (relu).
    u = user_ref[...].astype(bf16)                       # cast in-kernel
    y1 = (jnp.dot(u, w_ut1_ref[...], preferred_element_type=f32)
          + b_ut1_ref[...])
    if embed_dim % 128 == 0:
        # Lane-aligned static slices: each activation branch only on its own
        # half -> half the EUP tanh work, no iota/cmp/select VPU filler.
        h_u = _sigmoid_f32(y1[:, :embed_dim])
        h_t = jnp.maximum(y1[:, embed_dim:], 0.0)
        h1 = jnp.concatenate([h_u, h_t], axis=1)
    else:
        # embed boundary is mid-vreg (test path): keep the masked merge.
        lane1 = jax.lax.broadcasted_iota(jnp.int32, y1.shape, 1)
        h1 = jnp.where(lane1 < embed_dim, _sigmoid_f32(y1),
                       jnp.maximum(y1, 0.0))

    # Layer 2: block-diagonal [W_u2 0; 0 W_t2], zero-padded to a 128-multiple
    # of output lanes -> lane-dense unmasked store.
    # TODO(synk): if the bundle shows MXU-bound at embed_dim=512-scale, split
    # this: keep the user matmul at K=embed_dim and produce the single `time`
    # lane via a VPU multiply + lane reduce written into lane know_num.
    y2 = (jnp.dot(h1.astype(bf16), w_ut2_ref[...], preferred_element_type=f32)
          + b_ut2_ref[...])
    lane2 = jax.lax.broadcasted_iota(jnp.int32, y2.shape, 1)
    # lanes [0, know_num): sigmoid (user_emb); lane know_num: relu (time);
    # padding lanes: relu(0) = 0 (sliced away in the wrapper).
    ut_out_ref[...] = jnp.where(lane2 < know_num, _sigmoid_f32(y2),
                                jnp.maximum(y2, 0.0)).astype(ut_out_ref.dtype)

    # ------------------------------ item_enc ---------------------------------
    it = item_ref[...].astype(bf16)
    z1 = _sigmoid_f32(jnp.dot(it, w_i1_ref[...], preferred_element_type=f32)
                      + b_i1_ref[...])
    z2 = _sigmoid_f32(jnp.dot(z1.astype(bf16), w_i2_ref[...],
                              preferred_element_type=f32) + b_i2_ref[...])
    z3 = (jnp.dot(z2.astype(bf16), w_i3_ref[...], preferred_element_type=f32)
          + b_i3_ref[...])
    item_out_ref[...] = _sigmoid_f32(z3).astype(item_out_ref.dtype)


# ------------------------- parameter construction ----------------------------

def _linear_params(key, in_dim, out_dim):
    """PyTorch nn.Linear default init: U(-1/sqrt(in), 1/sqrt(in))."""
    kw, kb = jax.random.split(key)
    bound = 1.0 / math.sqrt(in_dim)
    w = jax.random.uniform(kw, (out_dim, in_dim), jnp.float32, -bound, bound)
    b = jax.random.uniform(kb, (out_dim,), jnp.float32, -bound, bound)
    return w.T, b           # (in, out), (out,)


def make_mlp_encoder_params(key, user_num, exer_num, know_num, embed_dim):
    keys = jax.random.split(key, 7)
    w_u1, b_u1 = _linear_params(keys[0], exer_num, embed_dim)
    w_u2, b_u2 = _linear_params(keys[1], embed_dim, know_num)
    w_t1, b_t1 = _linear_params(keys[2], exer_num, embed_dim)
    w_t2, b_t2 = _linear_params(keys[3], embed_dim, 1)
    w_i1, b_i1 = _linear_params(keys[4], user_num, embed_dim)
    w_i2, b_i2 = _linear_params(keys[5], embed_dim, embed_dim)
    w_i3, b_i3 = _linear_params(keys[6], embed_dim, know_num)

    out_pad = _round_up(know_num + 1, 128)

    # Merged layer 1 (shared `user` input): one (exer, 2*embed) matmul.
    w_ut1 = jnp.concatenate([w_u1, w_t1], axis=1)            # (exer, 2*embed)
    b_ut1 = jnp.concatenate([b_u1, b_t1])[None, :]           # (1, 2*embed)

    # Merged layer 2: block-diagonal, zero-padded to out_pad lanes.
    # NOTE: padded columns must stay exactly zero (padded output lanes rely on it).
    w_ut2 = jnp.zeros((2 * embed_dim, out_pad), jnp.float32)
    w_ut2 = w_ut2.at[:embed_dim, :know_num].set(w_u2)
    w_ut2 = w_ut2.at[embed_dim:, know_num].set(w_t2[:, 0])
    b_ut2 = jnp.zeros((1, out_pad), jnp.float32)
    b_ut2 = b_ut2.at[0, :know_num].set(b_u2).at[0, know_num].set(b_t2[0])

    # item layer 3 padded to out_pad lanes (lane-dense store).
    w_i3p = jnp.zeros((embed_dim, out_pad), jnp.float32).at[:, :know_num].set(w_i3)
    b_i3p = jnp.zeros((1, out_pad), jnp.float32).at[0, :know_num].set(b_i3)

    bf16 = jnp.bfloat16
    params = {
        "w_ut1": w_ut1.astype(bf16), "b_ut1": b_ut1,
        "w_ut2": w_ut2.astype(bf16), "b_ut2": b_ut2,
        "w_i1": w_i1.astype(bf16), "b_i1": b_i1[None, :],
        "w_i2": w_i2.astype(bf16), "b_i2": b_i2[None, :],
        "w_i3": w_i3p.astype(bf16), "b_i3": b_i3p,
        "know_num": know_num, "embed_dim": embed_dim, "out_pad": out_pad,
        # f32 originals kept only for the reference check in __main__.
        "_ref": (w_u1, b_u1, w_u2, b_u2, w_t1, b_t1, w_t2, b_t2,
                 w_i1, b_i1, w_i2, b_i2, w_i3, b_i3),
    }
    return params


# --------------------------------- forward -----------------------------------

def mlp_encoder_forward(params, user, item, *, tile_b=256,
                        out_dtype=jnp.float32):
    """Mirrors MLP_Encoder.forward: returns (user_emb, item_emb, time.view(-1)).

    tile_b: batch-tile rows. 256 matches the v6e MXU / HBM-roofline sweet
    spot; use 128 on v5e. Clamped to round_up(batch, 8) for tiny batches.
    out_dtype: set to jnp.bfloat16 to halve output store bytes if downstream
    consumers tolerate it (default f32 preserves module semantics).
    """
    know_num = params["know_num"]
    embed_dim = params["embed_dim"]
    out_pad = params["out_pad"]

    bu, exer = user.shape
    bi, unum = item.shape

    tb = min(tile_b, _round_up(max(bu, bi), 8))
    nb_u = pl.cdiv(bu, tb)
    nb_i = pl.cdiv(bi, tb)
    nb = max(nb_u, nb_i)

    # Row-tiled maps for activations/outputs. If the two batches need a
    # different number of tiles (rare), clamp the smaller stream to its last
    # block (redundant but identical recompute/rewrite -> still correct).
    def _row_map(n_blocks):
        if n_blocks == nb:
            return lambda i: (i, 0)
        return lambda i: (jnp.minimum(i, n_blocks - 1), 0)

    u_map = _row_map(nb_u)
    i_map = _row_map(nb_i)
    const2 = lambda i: (0, 0)       # weights/biases: DMA'd once, VMEM-resident

    # TODO(synk): low priority — pack the six (1, N) bias tensors into one ref
    # to trim per-ref pipeline bookkeeping.
    in_specs = [
        pl.BlockSpec((tb, exer), u_map),
        pl.BlockSpec((tb, unum), i_map),
        pl.BlockSpec(params["w_ut1"].shape, const2),
        pl.BlockSpec(params["b_ut1"].shape, const2),
        pl.BlockSpec(params["w_ut2"].shape, const2),
        pl.BlockSpec(params["b_ut2"].shape, const2),
        pl.BlockSpec(params["w_i1"].shape, const2),
        pl.BlockSpec(params["b_i1"].shape, const2),
        pl.BlockSpec(params["w_i2"].shape, const2),
        pl.BlockSpec(params["b_i2"].shape, const2),
        pl.BlockSpec(params["w_i3"].shape, const2),
        pl.BlockSpec(params["b_i3"].shape, const2),
    ]
    out_specs = (pl.BlockSpec((tb, out_pad), u_map),
                 pl.BlockSpec((tb, out_pad), i_map))
    out_shape = (jax.ShapeDtypeStruct((bu, out_pad), out_dtype),
                 jax.ShapeDtypeStruct((bi, out_pad), out_dtype))

    kernel = functools.partial(_mlp_encoder_kernel,
                               embed_dim=embed_dim, know_num=know_num)

    ut_out, item_out = pl.pallas_call(
        kernel,
        out_shape=out_shape,
        grid_spec=pltpu.PrefetchScalarGridSpec(
            num_scalar_prefetch=0,
            grid=(nb,),
            in_specs=in_specs,
            out_specs=out_specs),
        compiler_params=pltpu.CompilerParams(
            dimension_semantics=("parallel",),
            vmem_limit_bytes=_vmem_limit_bytes()),
    )(user, item,
      params["w_ut1"], params["b_ut1"], params["w_ut2"], params["b_ut2"],
      params["w_i1"], params["b_i1"], params["w_i2"], params["b_i2"],
      params["w_i3"], params["b_i3"])

    # NOTE: downstream consumers that can index the padded slabs directly
    # should do so and skip these slices (they are extra XLA ops).
    user_emb = ut_out[:, :know_num]
    time = ut_out[:, know_num]          # == time.view(-1)
    item_emb = item_out[:, :know_num]
    return user_emb, item_emb, time


# ---------------------------------- main --------------------------------------

if __name__ == "__main__":
    # Small, module-consistent sizes.
    user_num, exer_num, know_num, embed_dim = 24, 32, 16, 32
    batch = 8

    key = jax.random.PRNGKey(0)
    k_params, k_user, k_item = jax.random.split(key, 3)

    params = make_mlp_encoder_params(k_params, user_num, exer_num, know_num,
                                     embed_dim)

    # `user`: per-user interaction vector over exercises; `item`: per-exercise
    # interaction vector over users (as the Linear in_features imply).
    user = jax.random.uniform(k_user, (batch, exer_num), jnp.float32)
    item = jax.random.uniform(k_item, (batch, user_num), jnp.float32)

    user_emb, item_emb, time = mlp_encoder_forward(params, user, item)
    jax.block_until_ready((user_emb, item_emb, time))

    assert user_emb.shape == (batch, know_num)
    assert item_emb.shape == (batch, know_num)
    assert time.shape == (batch,)

    # Pure-JAX f32 reference (un-merged weights); bf16 matmuls -> loose atol.
    (w_u1, b_u1, w_u2, b_u2, w_t1, b_t1, w_t2, b_t2,
     w_i1, b_i1, w_i2, b_i2, w_i3, b_i3) = params["_ref"]
    sig = jax.nn.sigmoid
    ue_ref = sig(sig(user @ w_u1 + b_u1) @ w_u2 + b_u2)
    tm_ref = jnp.maximum(jnp.maximum(user @ w_t1 + b_t1, 0.0) @ w_t2 + b_t2,
                         0.0)[:, 0]
    ie_ref = sig(sig(sig(item @ w_i1 + b_i1) @ w_i2 + b_i2) @ w_i3 + b_i3)
    assert jnp.allclose(user_emb, ue_ref, atol=5e-2)
    assert jnp.allclose(item_emb, ie_ref, atol=5e-2)
    assert jnp.allclose(time, tm_ref, atol=5e-2)

    print("KERNEL_OK")
</pallas_src>

<mosaic_0001>
module attributes {stable_mosaic.version = 11 : i64} {
  func.func @_mlp_encoder_kernel(%arg0: i32, %arg1: memref<8x32xf32, #tpu.memory_space<vmem>>, %arg2: memref<8x24xf32, #tpu.memory_space<vmem>>, %arg3: memref<32x64xbf16, #tpu.memory_space<vmem>>, %arg4: memref<1x64xf32, #tpu.memory_space<vmem>>, %arg5: memref<64x128xbf16, #tpu.memory_space<vmem>>, %arg6: memref<1x128xf32, #tpu.memory_space<vmem>>, %arg7: memref<24x32xbf16, #tpu.memory_space<vmem>>, %arg8: memref<1x32xf32, #tpu.memory_space<vmem>>, %arg9: memref<32x32xbf16, #tpu.memory_space<vmem>>, %arg10: memref<1x32xf32, #tpu.memory_space<vmem>>, %arg11: memref<32x128xbf16, #tpu.memory_space<vmem>>, %arg12: memref<1x128xf32, #tpu.memory_space<vmem>>, %arg13: memref<8x128xf32, #tpu.memory_space<vmem>>, %arg14: memref<8x128xf32, #tpu.memory_space<vmem>>) attributes {dimension_semantics = [#tpu.dimension_semantics<parallel>], iteration_bounds = array<i64: 1>, scalar_prefetch = 0 : i64, scratch_operands = 0 : i64, tpu.core_type = #tpu.core_type<tc>, window_params = [{transform_indices = @transform_0, window_bounds = array<i64: 8, 32>}, {transform_indices = @transform_1, window_bounds = array<i64: 8, 24>}, {pipeline_mode = #tpu.pipeline_mode<synchronous>, transform_indices = @transform_2, window_bounds = array<i64: 32, 64>}, {pipeline_mode = #tpu.pipeline_mode<synchronous>, transform_indices = @transform_3, window_bounds = array<i64: 1, 64>}, {pipeline_mode = #tpu.pipeline_mode<synchronous>, transform_indices = @transform_4, window_bounds = array<i64: 64, 128>}, {pipeline_mode = #tpu.pipeline_mode<synchronous>, transform_indices = @transform_5, window_bounds = array<i64: 1, 128>}, {pipeline_mode = #tpu.pipeline_mode<synchronous>, transform_indices = @transform_6, window_bounds = array<i64: 24, 32>}, {pipeline_mode = #tpu.pipeline_mode<synchronous>, transform_indices = @transform_7, window_bounds = array<i64: 1, 32>}, {pipeline_mode = #tpu.pipeline_mode<synchronous>, transform_indices = @transform_8, window_bounds = array<i64: 32, 32>}, {pipeline_mode = #tpu.pipeline_mode<synchronous>, transform_indices = @transform_9, window_bounds = array<i64: 1, 32>}, {pipeline_mode = #tpu.pipeline_mode<synchronous>, transform_indices = @transform_10, window_bounds = array<i64: 32, 128>}, {pipeline_mode = #tpu.pipeline_mode<synchronous>, transform_indices = @transform_11, window_bounds = array<i64: 1, 128>}, {transform_indices = @transform_12, window_bounds = array<i64: 8, 128>}, {transform_indices = @transform_13, window_bounds = array<i64: 8, 128>}]} {
    %c0 = arith.constant 0 : index
    %c0_0 = arith.constant 0 : index
    %0 = vector.load %arg1[%c0, %c0_0] : memref<8x32xf32, #tpu.memory_space<vmem>>, vector<8x32xf32>
    %1 = arith.truncf %0 : vector<8x32xf32> to vector<8x32xbf16>
    %c0_1 = arith.constant 0 : index
    %c0_2 = arith.constant 0 : index
    %2 = vector.load %arg3[%c0_1, %c0_2] : memref<32x64xbf16, #tpu.memory_space<vmem>>, vector<32x64xbf16>
    %cst = arith.constant dense<0.000000e+00> : vector<8x64xf32>
    %3 = tpu.matmul %1, %2, %cst {dimension_numbers = #tpu.dot_dimension_numbers<[1], [0], [0], [1], [0, 0, 1, 1], [], []>} : vector<8x32xbf16>, vector<32x64xbf16>, vector<8x64xf32> -> vector<8x64xf32>
    %c0_3 = arith.constant 0 : index
    %c0_4 = arith.constant 0 : index
    %4 = vector.load %arg4[%c0_3, %c0_4] : memref<1x64xf32, #tpu.memory_space<vmem>>, vector<1x64xf32>
    %5 = vector.broadcast %4 : vector<1x64xf32> to vector<8x64xf32>
    %6 = arith.addf %3, %5 : vector<8x64xf32>
    %7 = tpu.iota {dimensions = array<i32: 1>} : vector<8x64xi32>
    %c32_i32 = arith.constant 32 : i32
    %8 = vector.broadcast %c32_i32 : i32 to vector<8x64xi32>
    %9 = arith.cmpi slt, %7, %8 : vector<8x64xi32>
    %cst_5 = arith.constant 5.000000e-01 : f32
    %10 = vector.broadcast %cst_5 : f32 to vector<8x64xf32>
    %11 = arith.mulf %10, %6 : vector<8x64xf32>
    %12 = math.tanh %11 : vector<8x64xf32>
    %cst_6 = arith.constant 5.000000e-01 : f32
    %13 = vector.broadcast %cst_6 : f32 to vector<8x64xf32>
    %14 = arith.mulf %13, %12 : vector<8x64xf32>
    %cst_7 = arith.constant 5.000000e-01 : f32
    %15 = vector.broadcast %cst_7 : f32 to vector<8x64xf32>
    %16 = arith.addf %14, %15 : vector<8x64xf32>
    %cst_8 = arith.constant 0.000000e+00 : f32
    %17 = vector.broadcast %cst_8 : f32 to vector<8x64xf32>
    %18 = arith.maximumf %6, %17 : vector<8x64xf32>
    %19 = arith.select %9, %16, %18 : vector<8x64xi1>, vector<8x64xf32>
    %20 = arith.truncf %19 : vector<8x64xf32> to vector<8x64xbf16>
    %c0_9 = arith.constant 0 : index
    %c0_10 = arith.constant 0 : index
    %21 = vector.load %arg5[%c0_9, %c0_10] : memref<64x128xbf16, #tpu.memory_space<vmem>>, vector<64x128xbf16>
    %cst_11 = arith.constant dense<0.000000e+00> : vector<8x128xf32>
    %22 = tpu.matmul %20, %21, %cst_11 {dimension_numbers = #tpu.dot_dimension_numbers<[1], [0], [0], [1], [0, 0, 1, 1], [], []>} : vector<8x64xbf16>, vector<64x128xbf16>, vector<8x128xf32> -> vector<8x128xf32>
    %c0_12 = arith.constant 0 : index
    %c0_13 = arith.constant 0 : index
    %23 = vector.load %arg6[%c0_12, %c0_13] : memref<1x128xf32, #tpu.memory_space<vmem>>, vector<1x128xf32>
    %24 = vector.broadcast %23 : vector<1x128xf32> to vector<8x128xf32>
    %25 = arith.addf %22, %24 : vector<8x128xf32>
    %26 = tpu.iota {dimensions = array<i32: 1>} : vector<8x128xi32>
    %c16_i32 = arith.constant 16 : i32
    %27 = vector.broadcast %c16_i32 : i32 to vector<8x128xi32>
    %28 = arith.cmpi slt, %26, %27 : vector<8x128xi32>
    %cst_14 = arith.constant 5.000000e-01 : f32
    %29 = vector.broadcast %cst_14 : f32 to vector<8x128xf32>
    %30 = arith.mulf %29, %25 : vector<8x128xf32>
    %31 = math.tanh %30 : vector<8x128xf32>
    %cst_15 = arith.constant 5.000000e-01 : f32
    %32 = vector.broadcast %cst_15 : f32 to vector<8x128xf32>
    %33 = arith.mulf %32, %31 : vector<8x128xf32>
    %cst_16 = arith.constant 5.000000e-01 : f32
    %34 = vector.broadcast %cst_16 : f32 to vector<8x128xf32>
    %35 = arith.addf %33, %34 : vector<8x128xf32>
    %cst_17 = arith.constant 0.000000e+00 : f32
    %36 = vector.broadcast %cst_17 : f32 to vector<8x128xf32>
    %37 = arith.maximumf %25, %36 : vector<8x128xf32>
    %38 = arith.select %28, %35, %37 : vector<8x128xi1>, vector<8x128xf32>
    %c0_18 = arith.constant 0 : index
    %c0_19 = arith.constant 0 : index
    %39 = vector.load %arg13[%c0_18, %c0_19] : memref<8x128xf32, #tpu.memory_space<vmem>>, vector<8x128xf32>
    tpu.vector_store %arg13[%c0_18, %c0_19], %38 {strides = array<i32>} : memref<8x128xf32, #tpu.memory_space<vmem>>, vector<8x128xf32>,
    %c0_20 = arith.constant 0 : index
    %c0_21 = arith.constant 0 : index
    %40 = vector.load %arg2[%c0_20, %c0_21] : memref<8x24xf32, #tpu.memory_space<vmem>>, vector<8x24xf32>
    %41 = arith.truncf %40 : vector<8x24xf32> to vector<8x24xbf16>
    %c0_22 = arith.constant 0 : index
    %c0_23 = arith.constant 0 : index
    %42 = vector.load %arg7[%c0_22, %c0_23] : memref<24x32xbf16, #tpu.memory_space<vmem>>, vector<24x32xbf16>
    %cst_24 = arith.constant dense<0.000000e+00> : vector<8x32xf32>
    %43 = tpu.matmul %41, %42, %cst_24 {dimension_numbers = #tpu.dot_dimension_numbers<[1], [0], [0], [1], [0, 0, 1, 1], [], []>} : vector<8x24xbf16>, vector<24x32xbf16>, vector<8x32xf32> -> vector<8x32xf32>
    %c0_25 = arith.constant 0 : index
    %c0_26 = arith.constant 0 : index
    %44 = vector.load %arg8[%c0_25, %c0_26] : memref<1x32xf32, #tpu.memory_space<vmem>>, vector<1x32xf32>
    %45 = vector.broadcast %44 : vector<1x32xf32> to vector<8x32xf32>
    %46 = arith.addf %43, %45 : vector<8x32xf32>
    %cst_27 = arith.constant 5.000000e-01 : f32
    %47 = vector.broadcast %cst_27 : f32 to vector<8x32xf32>
    %48 = arith.mulf %47, %46 : vector<8x32xf32>
    %49 = math.tanh %48 : vector<8x32xf32>
    %cst_28 = arith.constant 5.000000e-01 : f32
    %50 = vector.broadcast %cst_28 : f32 to vector<8x32xf32>
    %51 = arith.mulf %50, %49 : vector<8x32xf32>
    %cst_29 = arith.constant 5.000000e-01 : f32
    %52 = vector.broadcast %cst_29 : f32 to vector<8x32xf32>
    %53 = arith.addf %51, %52 : vector<8x32xf32>
    %54 = arith.truncf %53 : vector<8x32xf32> to vector<8x32xbf16>
    %c0_30 = arith.constant 0 : index
    %c0_31 = arith.constant 0 : index
    %55 = vector.load %arg9[%c0_30, %c0_31] : memref<32x32xbf16, #tpu.memory_space<vmem>>, vector<32x32xbf16>
    %cst_32 = arith.constant dense<0.000000e+00> : vector<8x32xf32>
    %56 = tpu.matmul %54, %55, %cst_32 {dimension_numbers = #tpu.dot_dimension_numbers<[1], [0], [0], [1], [0, 0, 1, 1], [], []>} : vector<8x32xbf16>, vector<32x32xbf16>, vector<8x32xf32> -> vector<8x32xf32>
    %c0_33 = arith.constant 0 : index
    %c0_34 = arith.constant 0 : index
    %57 = vector.load %arg10[%c0_33, %c0_34] : memref<1x32xf32, #tpu.memory_space<vmem>>, vector<1x32xf32>
    %58 = vector.broadcast %57 : vector<1x32xf32> to vector<8x32xf32>
    %59 = arith.addf %56, %58 : vector<8x32xf32>
    %cst_35 = arith.constant 5.000000e-01 : f32
    %60 = vector.broadcast %cst_35 : f32 to vector<8x32xf32>
    %61 = arith.mulf %60, %59 : vector<8x32xf32>
    %62 = math.tanh %61 : vector<8x32xf32>
    %cst_36 = arith.constant 5.000000e-01 : f32
    %63 = vector.broadcast %cst_36 : f32 to vector<8x32xf32>
    %64 = arith.mulf %63, %62 : vector<8x32xf32>
    %cst_37 = arith.constant 5.000000e-01 : f32
    %65 = vector.broadcast %cst_37 : f32 to vector<8x32xf32>
    %66 = arith.addf %64, %65 : vector<8x32xf32>
    %67 = arith.truncf %66 : vector<8x32xf32> to vector<8x32xbf16>
    %c0_38 = arith.constant 0 : index
    %c0_39 = arith.constant 0 : index
    %68 = vector.load %arg11[%c0_38, %c0_39] : memref<32x128xbf16, #tpu.memory_space<vmem>>, vector<32x128xbf16>
    %cst_40 = arith.constant dense<0.000000e+00> : vector<8x128xf32>
    %69 = tpu.matmul %67, %68, %cst_40 {dimension_numbers = #tpu.dot_dimension_numbers<[1], [0], [0], [1], [0, 0, 1, 1], [], []>} : vector<8x32xbf16>, vector<32x128xbf16>, vector<8x128xf32> -> vector<8x128xf32>
    %c0_41 = arith.constant 0 : index
    %c0_42 = arith.constant 0 : index
    %70 = vector.load %arg12[%c0_41, %c0_42] : memref<1x128xf32, #tpu.memory_space<vmem>>, vector<1x128xf32>
    %71 = vector.broadcast %70 : vector<1x128xf32> to vector<8x128xf32>
    %72 = arith.addf %69, %71 : vector<8x128xf32>
    %cst_43 = arith.constant 5.000000e-01 : f32
    %73 = vector.broadcast %cst_43 : f32 to vector<8x128xf32>
    %74 = arith.mulf %73, %72 : vector<8x128xf32>
    %75 = math.tanh %74 : vector<8x128xf32>
    %cst_44 = arith.constant 5.000000e-01 : f32
    %76 = vector.broadcast %cst_44 : f32 to vector<8x128xf32>
    %77 = arith.mulf %76, %75 : vector<8x128xf32>
    %cst_45 = arith.constant 5.000000e-01 : f32
    %78 = vector.broadcast %cst_45 : f32 to vector<8x128xf32>
    %79 = arith.addf %77, %78 : vector<8x128xf32>
    %c0_46 = arith.constant 0 : index
    %c0_47 = arith.constant 0 : index
    %80 = vector.load %arg14[%c0_46, %c0_47] : memref<8x128xf32, #tpu.memory_space<vmem>>, vector<8x128xf32>
    tpu.vector_store %arg14[%c0_46, %c0_47], %79 {strides = array<i32>} : memref<8x128xf32, #tpu.memory_space<vmem>>, vector<8x128xf32>,
    return
  }
  func.func @transform_0(%arg0: i32) -> (i32, i32) {
    %c0_i32 = arith.constant 0 : i32
    %c0_i32_0 = arith.constant 0 : i32
    return %arg0, %c0_i32 : i32, i32
  }
  func.func @transform_1(%arg0: i32) -> (i32, i32) {
    %c0_i32 = arith.constant 0 : i32
    %c0_i32_0 = arith.constant 0 : i32
    return %arg0, %c0_i32 : i32, i32
  }
  func.func @transform_2(%arg0: i32) -> (i32, i32) {
    %c0_i32 = arith.constant 0 : i32
    %c0_i32_0 = arith.constant 0 : i32
    %c0_i32_1 = arith.constant 0 : i32
    return %c0_i32, %c0_i32_0 : i32, i32
  }
  func.func @transform_3(%arg0: i32) -> (i32, i32) {
    %c0_i32 = arith.constant 0 : i32
    %c0_i32_0 = arith.constant 0 : i32
    %c0_i32_1 = arith.constant 0 : i32
    return %c0_i32, %c0_i32_0 : i32, i32
  }
  func.func @transform_4(%arg0: i32) -> (i32, i32) {
    %c0_i32 = arith.constant 0 : i32
    %c0_i32_0 = arith.constant 0 : i32
    %c0_i32_1 = arith.constant 0 : i32
    return %c0_i32, %c0_i32_0 : i32, i32
  }
  func.func @transform_5(%arg0: i32) -> (i32, i32) {
    %c0_i32 = arith.constant 0 : i32
    %c0_i32_0 = arith.constant 0 : i32
    %c0_i32_1 = arith.constant 0 : i32
    return %c0_i32, %c0_i32_0 : i32, i32
  }
  func.func @transform_6(%arg0: i32) -> (i32, i32) {
    %c0_i32 = arith.constant 0 : i32
    %c0_i32_0 = arith.constant 0 : i32
    %c0_i32_1 = arith.constant 0 : i32
    return %c0_i32, %c0_i32_0 : i32, i32
  }
  func.func @transform_7(%arg0: i32) -> (i32, i32) {
    %c0_i32 = arith.constant 0 : i32
    %c0_i32_0 = arith.constant 0 : i32
    %c0_i32_1 = arith.constant 0 : i32
    return %c0_i32, %c0_i32_0 : i32, i32
  }
  func.func @transform_8(%arg0: i32) -> (i32, i32) {
    %c0_i32 = arith.constant 0 : i32
    %c0_i32_0 = arith.constant 0 : i32
    %c0_i32_1 = arith.constant 0 : i32
    return %c0_i32, %c0_i32_0 : i32, i32
  }
  func.func @transform_9(%arg0: i32) -> (i32, i32) {
    %c0_i32 = arith.constant 0 : i32
    %c0_i32_0 = arith.constant 0 : i32
    %c0_i32_1 = arith.constant 0 : i32
    return %c0_i32, %c0_i32_0 : i32, i32
  }
  func.func @transform_10(%arg0: i32) -> (i32, i32) {
    %c0_i32 = arith.constant 0 : i32
    %c0_i32_0 = arith.constant 0 : i32
    %c0_i32_1 = arith.constant 0 : i32
    return %c0_i32, %c0_i32_0 : i32, i32
  }
  func.func @transform_11(%arg0: i32) -> (i32, i32) {
    %c0_i32 = arith.constant 0 : i32
    %c0_i32_0 = arith.constant 0 : i32
    %c0_i32_1 = arith.constant 0 : i32
    return %c0_i32, %c0_i32_0 : i32, i32
  }
  func.func @transform_12(%arg0: i32) -> (i32, i32) {
    %c0_i32 = arith.constant 0 : i32
    %c0_i32_0 = arith.constant 0 : i32
    return %arg0, %c0_i32 : i32, i32
  }
  func.func @transform_13(%arg0: i32) -> (i32, i32) {
    %c0_i32 = arith.constant 0 : i32
    %c0_i32_0 = arith.constant 0 : i32
    return %arg0, %c0_i32 : i32, i32
  }
}

</mosaic_0001>

<llo_original>
// kernel: tpu_custom_call.1
$region0: #{tpu_custom_call.1}
  #allocation0 [shape = 'u32[]', space=smem, size = 0x4, offset = 0x4, fixed_abs, tag = 'smem constant byte address 0x4 - core index']
  #allocation1 [shape = 'u32[144,128]{1,0:T(1,128)}', space=vmem, size = 0x12000, scoped, tag = 'internal scratch']
  %s0 = inlined_call_operand.hbm [shape: f32[8,32], index: 0, kind: input, shape index: {}]
  %s1 = inlined_call_operand.hbm [shape: f32[8,24], index: 1, kind: input, shape index: {}]
  %s2 = inlined_call_operand.hbm [shape: bf16[32,64], index: 2, kind: input, shape index: {}]
  %s3 = inlined_call_operand.vmem [shape: f32[1,64], index: 3, kind: input, shape index: {}]
  %s4 = inlined_call_operand.hbm [shape: bf16[64,128], index: 4, kind: input, shape index: {}]
  %s5 = inlined_call_operand.vmem [shape: f32[1,128], index: 5, kind: input, shape index: {}]
  %s6 = inlined_call_operand.hbm [shape: bf16[24,32], index: 6, kind: input, shape index: {}]
  %s7 = inlined_call_operand.hbm [shape: f32[1,32], index: 7, kind: input, shape index: {}]
  %s8 = inlined_call_operand.hbm [shape: bf16[32,32], index: 8, kind: input, shape index: {}]
  %s9 = inlined_call_operand.hbm [shape: f32[1,32], index: 9, kind: input, shape index: {}]
  %s10 = inlined_call_operand.vmem [shape: bf16[32,128], index: 10, kind: input, shape index: {}]
  %s11 = inlined_call_operand.vmem [shape: f32[1,128], index: 11, kind: input, shape index: {}]
  %s12 = inlined_call_operand.hbm [shape: f32[8,128], index: 12, kind: output, shape index: {0}]
  %s13 = inlined_call_operand.hbm [shape: f32[8,128], index: 13, kind: output, shape index: {1}]
  %14 = xla_tuple %s12, %s13
  %s15 = sld [smem:[#allocation0]]
  $region98: #{tpu_custom_call.1} parent=0
    _
  %s17 = ssub.s32 1, %s15
  %s18 = scalar_select 0, %s17, %s15
  $region1: #{tpu_custom_call.1} parent=0
    #allocation2 [shape = 'u8[4096]{0}', space=vmem, size = 0x1000, scoped, tag = 'input window, operand 0, single buffered']
    #allocation3 [shape = 's32[1]{0}', space=sflag, size = 0x4, scoped, tag = 'scoped memory for tpu_custom_call.1']
    #allocation4 [shape = 's32[1]{0}', space=sflag, size = 0x4, scoped, tag = 'scoped memory for tpu_custom_call.1']
    #allocation5 [shape = 'u8[4096]{0}', space=vmem, size = 0x1000, scoped, tag = 'input window, operand 1, single buffered']
    #allocation6 [shape = 's32[1]{0}', space=sflag, size = 0x4, scoped, tag = 'scoped memory for tpu_custom_call.1']
    #allocation7 [shape = 'u8[8192]{0}', space=vmem, size = 0x2000, scoped, tag = 'input window, operand 2, single buffered']
    #allocation8 [shape = 'u8[16384]{0}', space=vmem, size = 0x4000, scoped, tag = 'input window, operand 4, single buffered']
    #allocation9 [shape = 's32[1]{0}', space=sflag, size = 0x4, scoped, tag = 'scoped memory for tpu_custom_call.1']
    #allocation10 [shape = 'u8[6144]{0}', space=vmem, size = 0x1800, scoped, tag = 'input window, operand 6, single buffered']
    #allocation11 [shape = 'u8[512]{0}', space=vmem, size = 0x400, scoped, tag = 'input window, operand 7, single buffered']
    #allocation12 [shape = 's32[1]{0}', space=sflag, size = 0x4, scoped, tag = 'scoped memory for tpu_custom_call.1']
    #allocation13 [shape = 'u8[8192]{0}', space=vmem, size = 0x2000, scoped, tag = 'input window, operand 8, single buffered']
    #allocation14 [shape = 'u8[512]{0}', space=vmem, size = 0x400, scoped, tag = 'input window, operand 9, single buffered']
    #allocation15 [shape = 's32[1]{0}', space=sflag, size = 0x4, scoped, tag = 'scoped memory for tpu_custom_call.1']
    #allocation16 [shape = 'u8[4096]{0}', space=vmem, size = 0x1000, scoped, tag = 'output window, operand 0, single buffered']
    #allocation17 [shape = 'u8[4096]{0}', space=vmem, size = 0x1000, scoped, tag = 'output window, operand 1, single buffered']
    #allocation18 [shape = 's32[1]{0}', space=sflag, size = 0x4, scoped, tag = 'scoped memory for tpu_custom_call.1']
    %19 = vsyncpa [#allocation3], 0
    %20 = vsyncpa [#allocation6], 0
    %21 = vsyncpa [#allocation9], 0
    %22 = vsyncpa [#allocation12], 0
    %23 = vsyncpa [#allocation15], 0
    %24 = vsyncpa [#allocation4], 0
    %25 = vsyncpa [#allocation18], 0
    // Predicated region
    $region2: #{tpu_custom_call.1} parent=1 // pred_check
      _
    $region3: #{tpu_custom_call.1} parent=1 // pred_check_branch
      %27 = sbr.rel (0) target = $region5
    $region4: #{tpu_custom_call.1} parent=1 // pred_region
      %s29 = ssub.s32 128, 128
      %30 = vsyncadd [#allocation3], %s29
      %s32 = sshll.u32 [#allocation2], 4
      %s33 = int_to_ptr.vmem [resolvable:$true] %s32
      %35 = dma.hbm_to_vmem [thread:$0]  %s0, 128, %s33, [#allocation3]
    $region5: #{tpu_custom_call.1} parent=1 // pred_fallthru
      _
    // Predicated region
    $region6: #{tpu_custom_call.1} parent=1 // pred_check
      _
    $region7: #{tpu_custom_call.1} parent=1 // pred_check_branch
      %37 = sbr.rel (0) target = $region9
    $region8: #{tpu_custom_call.1} parent=1 // pred_region
      %s39 = ssub.s32 128, 128
      %40 = vsyncadd [#allocation6], %s39
      %s42 = sshll.u32 [#allocation5], 4
      %s43 = int_to_ptr.vmem [resolvable:$true] %s42
      %45 = dma.hbm_to_vmem [thread:$0]  %s1, 128, %s43, [#allocation6]
    $region9: #{tpu_custom_call.1} parent=1 // pred_fallthru
      _
    // Predicated region
    $region10: #{tpu_custom_call.1} parent=1 // pred_check
      _
    $region11: #{tpu_custom_call.1} parent=1 // pred_check_branch
      %47 = sbr.rel (0) target = $region13
    $region12: #{tpu_custom_call.1} parent=1 // pred_region
      %s49 = ssub.s32 256, 256
      %50 = vsyncadd [#allocation6], %s49
      %s51 = sshll.u32 [#allocation7], 4
      %s52 = int_to_ptr.vmem [resolvable:$true] %s51
      %57 = dma.hbm_to_vmem [thread:$0]  %s2, 256, %s52, [#allocation6], 64, 64, 4
    $region13: #{tpu_custom_call.1} parent=1 // pred_fallthru
      _
    // Predicated region
    $region14: #{tpu_custom_call.1} parent=1 // pred_check
      _
    $region15: #{tpu_custom_call.1} parent=1 // pred_check_branch
      %59 = sbr.rel (0) target = $region17
    $region16: #{tpu_custom_call.1} parent=1 // pred_region
      _
    $region17: #{tpu_custom_call.1} parent=1 // pred_fallthru
      _
    // Predicated region
    $region18: #{tpu_custom_call.1} parent=1 // pred_check
      _
    $region19: #{tpu_custom_call.1} parent=1 // pred_check_branch
      %61 = sbr.rel (0) target = $region21
    $region20: #{tpu_custom_call.1} parent=1 // pred_region
      %s63 = ssub.s32 512, 512
      %64 = vsyncadd [#allocation9], %s63
      %s65 = sshll.u32 [#allocation8], 4
      %s66 = int_to_ptr.vmem [resolvable:$true] %s65
      %71 = dma.hbm_to_vmem [thread:$0]  %s4, 512, %s66, [#allocation9], 64, 64, 4
    $region21: #{tpu_custom_call.1} parent=1 // pred_fallthru
      _
    // Predicated region
    $region22: #{tpu_custom_call.1} parent=1 // pred_check
      _
    $region23: #{tpu_custom_call.1} parent=1 // pred_check_branch
      %73 = sbr.rel (0) target = $region25
    $region24: #{tpu_custom_call.1} parent=1 // pred_region
      _
    $region25: #{tpu_custom_call.1} parent=1 // pred_fallthru
      _
    // Predicated region
    $region26: #{tpu_custom_call.1} parent=1 // pred_check
      _
    $region27: #{tpu_custom_call.1} parent=1 // pred_check_branch
      %75 = sbr.rel (0) target = $region29
    $region28: #{tpu_custom_call.1} parent=1 // pred_region
      %s77 = ssub.s32 192, 192
      %78 = vsyncadd [#allocation9], %s77
      %s79 = sshll.u32 [#allocation10], 4
      %s80 = int_to_ptr.vmem [resolvable:$true] %s79
      %85 = dma.hbm_to_vmem [thread:$0]  %s6, 192, %s80, [#allocation9], 64, 64, 4
    $region29: #{tpu_custom_call.1} parent=1 // pred_fallthru
      _
    // Predicated region
    $region30: #{tpu_custom_call.1} parent=1 // pred_check
      _
    $region31: #{tpu_custom_call.1} parent=1 // pred_check_branch
      %87 = sbr.rel (0) target = $region33
    $region32: #{tpu_custom_call.1} parent=1 // pred_region
      %s89 = ssub.s32 16, 16
      %90 = vsyncadd [#allocation12], %s89
      %s92 = sshll.u32 [#allocation11], 4
      %s93 = int_to_ptr.vmem [resolvable:$true] %s92
      %95 = dma.hbm_to_vmem [thread:$0]  %s7, 16, %s93, [#allocation12]
    $region33: #{tpu_custom_call.1} parent=1 // pred_fallthru
      _
    // Predicated region
    $region34: #{tpu_custom_call.1} parent=1 // pred_check
      _
    $region35: #{tpu_custom_call.1} parent=1 // pred_check_branch
      %97 = sbr.rel (0) target = $region37
    $region36: #{tpu_custom_call.1} parent=1 // pred_region
      %s99 = ssub.s32 256, 256
      %100 = vsyncadd [#allocation12], %s99
      %s101 = sshll.u32 [#allocation13], 4
      %s102 = int_to_ptr.vmem [resolvable:$true] %s101
      %107 = dma.hbm_to_vmem [thread:$0]  %s8, 256, %s102, [#allocation12], 64, 64, 4
    $region37: #{tpu_custom_call.1} parent=1 // pred_fallthru
      _
    // Predicated region
    $region38: #{tpu_custom_call.1} parent=1 // pred_check
      _
    $region39: #{tpu_custom_call.1} parent=1 // pred_check_branch
      %109 = sbr.rel (0) target = $region41
    $region40: #{tpu_custom_call.1} parent=1 // pred_region
      %s111 = ssub.s32 16, 16
      %112 = vsyncadd [#allocation15], %s111
      %s114 = sshll.u32 [#allocation14], 4
      %s115 = int_to_ptr.vmem [resolvable:$true] %s114
      %117 = dma.hbm_to_vmem [thread:$0]  %s9, 16, %s115, [#allocation15]
    $region41: #{tpu_custom_call.1} parent=1 // pred_fallthru
      _
    // Predicated region
    $region42: #{tpu_custom_call.1} parent=1 // pred_check
      _
    $region43: #{tpu_custom_call.1} parent=1 // pred_check_branch
      %119 = sbr.rel (0) target = $region45
    $region44: #{tpu_custom_call.1} parent=1 // pred_region
      _
    $region45: #{tpu_custom_call.1} parent=1 // pred_fallthru
      _
    // Predicated region
    $region46: #{tpu_custom_call.1} parent=1 // pred_check
      _
    $region47: #{tpu_custom_call.1} parent=1 // pred_check_branch
      %121 = sbr.rel (0) target = $region49
    $region48: #{tpu_custom_call.1} parent=1 // pred_region
      _
    $region49: #{tpu_custom_call.1} parent=1 // pred_fallthru
      _
    // Predicated region
    $region50: #{tpu_custom_call.1} parent=1 // pred_check
      _
    $region51: #{tpu_custom_call.1} parent=1 // pred_check_branch
      %123 = sbr.rel (0) target = $region53
    $region52: #{tpu_custom_call.1} parent=1 // pred_region
      %124 = dma.done [#allocation3], 128
    $region53: #{tpu_custom_call.1} parent=1 // pred_fallthru
      _
    // Predicated region
    $region54: #{tpu_custom_call.1} parent=1 // pred_check
      _
    $region55: #{tpu_custom_call.1} parent=1 // pred_check_branch
      %126 = sbr.rel (0) target = $region57
    $region56: #{tpu_custom_call.1} parent=1 // pred_region
      %127 = dma.done [#allocation6], 128
    $region57: #{tpu_custom_call.1} parent=1 // pred_fallthru
      _
    // Predicated region
    $region58: #{tpu_custom_call.1} parent=1 // pred_check
      _
    $region59: #{tpu_custom_call.1} parent=1 // pred_check_branch
      %129 = sbr.rel (0) target = $region61
    $region60: #{tpu_custom_call.1} parent=1 // pred_region
      %130 = dma.done [#allocation6], 256
    $region61: #{tpu_custom_call.1} parent=1 // pred_fallthru
      _
    // Predicated region
    $region62: #{tpu_custom_call.1} parent=1 // pred_check
      _
    $region63: #{tpu_custom_call.1} parent=1 // pred_check_branch
      %132 = sbr.rel (0) target = $region65
    $region64: #{tpu_custom_call.1} parent=1 // pred_region
      %133 = dma.done [#allocation9], 512
    $region65: #{tpu_custom_call.1} parent=1 // pred_fallthru
      _
    // Predicated region
    $region66: #{tpu_custom_call.1} parent=1 // pred_check
      _
    $region67: #{tpu_custom_call.1} parent=1 // pred_check_branch
      %135 = sbr.rel (0) target = $region69
    $region68: #{tpu_custom_call.1} parent=1 // pred_region
      %136 = dma.done [#allocation9], 192
    $region69: #{tpu_custom_call.1} parent=1 // pred_fallthru
      _
    // Predicated region
    $region70: #{tpu_custom_call.1} parent=1 // pred_check
      _
    $region71: #{tpu_custom_call.1} parent=1 // pred_check_branch
      %138 = sbr.rel (0) target = $region73
    $region72: #{tpu_custom_call.1} parent=1 // pred_region
      %139 = dma.done [#allocation12], 16
    $region73: #{tpu_custom_call.1} parent=1 // pred_fallthru
      _
    // Predicated region
    $region74: #{tpu_custom_call.1} parent=1 // pred_check
      _
    $region75: #{tpu_custom_call.1} parent=1 // pred_check_branch
      %141 = sbr.rel (0) target = $region77
    $region76: #{tpu_custom_call.1} parent=1 // pred_region
      %142 = dma.done [#allocation12], 256
    $region77: #{tpu_custom_call.1} parent=1 // pred_fallthru
      _
    // Predicated region
    $region78: #{tpu_custom_call.1} parent=1 // pred_check
      _
    $region79: #{tpu_custom_call.1} parent=1 // pred_check_branch
      %144 = sbr.rel (0) target = $region81
    $region80: #{tpu_custom_call.1} parent=1 // pred_region
      %145 = dma.done [#allocation15], 16
    $region81: #{tpu_custom_call.1} parent=1 // pred_fallthru
      _
    %v147 = vld [vmem:[#allocation2] sm:$0xff]
    %v148 = vpack.c.bf16 %v147, %v147
    %v149 = vld [vmem:[#allocation7] sm:$0xf]
    %v150 = vld [vmem:[#allocation7 + $0x4] sm:$0xf]
    %v151 = vld [vmem:[#allocation7 + $0x8] sm:$0xf]
    %v152 = vld [vmem:[#allocation7 + $0xc] sm:$0xf]
    %v153 = vld [vmem:[%s3] sm:$0x1]
    %v155 = vlaneseq
    %v156 = vshrl.u32 %v155, 7
    %v157 = vsub.s32 0, %v156
    %v158 = vrot.slane %v153, %v157
    %v164 = vunpack.c.l.b16 %v149
    %v165 = vunpack.c.l.b16 %v150
    %v166 = vunpack.c.l.b16 %v151
    %v167 = vunpack.c.l.b16 %v152
    %v168 = vpack.c.b16 %v165, %v164
    %v169 = vpack.c.b16 %v167, %v166
    %vm172 = vcmask 261120
    %v174 = vsel %vm172, %v148, 0
    %176 = vmatprep.subr.bf16.mxu0 0
    %177 = vmatpush1.bf16.msra.mxu0 0
    %178 = vmatprep.subr.bf16.mxu0 0
    %179 = vmatpush1.bf16.msra.mxu0 0
    %180 = vmatprep.subr.bf16.mxu0 0
    %181 = vmatpush1.bf16.msra.mxu0 0
    %182 = vmatprep.subr.bf16.mxu0 0
    %183 = vmatpush1.bf16.msra.mxu0 0
    %184 = vmatprep.subr.bf16.mxu0 0
    %185 = vmatpush1.bf16.msra.mxu0 0
    %186 = vmatprep.subr.bf16.mxu0 0
    %187 = vmatpush1.bf16.msra.mxu0 0
    %188 = vmatprep.subr.bf16.mxu0 0
    %189 = vmatpush1.bf16.msra.mxu0 %v169
    %190 = vmatprep.subr.bf16.mxu0 0
    %191 = vmatpush1.bf16.msra.mxu0 %v168
    %192 = vmatprep.subr.bf16.mxu0 0
    %193 = vmatpush2.bf16.msra.mxu0 0
    %194 = vmatprep.subr.bf16.mxu0 0
    %195 = vmatpush2.bf16.msra.mxu0 0
    %196 = vmatprep.subr.bf16.mxu0 0
    %197 = vmatpush2.bf16.msra.mxu0 0
    %198 = vmatprep.subr.bf16.mxu0 0
    %199 = vmatpush2.bf16.msra.mxu0 0
    %200 = vmatprep.subr.bf16.mxu0 0
    %201 = vmatpush2.bf16.msra.mxu0 0
    %202 = vmatprep.subr.bf16.mxu0 0
    %203 = vmatpush2.bf16.msra.mxu0 0
    %204 = vmatprep.subr.bf16.mxu0 0
    %205 = vmatpush2.bf16.msra.mxu0 0
    %206 = vmatprep.subr.bf16.mxu0 0
    %207 = vmatpush2.bf16.msra.mxu0 0
    %208 = vmatprep.mubr.bf16.mxu0 0
    %209 = vmatmul.mubr.bf16.gmra.mxu0 %v174
    %v210 = vpop.f32.mrf.mxu0
    %v211 = vadd.f32 %v158, %v210
    %v212 = vpop.f32.mrf.mxu0
    %v213 = vpop.f32.mrf.mxu0
    %v214 = vpop.f32.mrf.mxu0
    %215 = vdwg.mxu0
    %v216 = vlaneseq
    %v217 = vand.u32 %v216, 127
    %vm218 = vcmp.lt.s32.totalorder %v217, 32
    %v219 = vmul.f32 %v211, 0.5
    %v220 = vtanh.pop %v219
    %v221 = vmul.f32 %v220, 0.5
    %v222 = vadd.f32 %v221, 0.5
    %v223 = vmax.f32 %v211, 0.0
    %v224 = vsel %vm218, %v222, %v223
    %v225 = vpack.c.bf16 %v224, %v224
    %v226 = vld [vmem:[#allocation8] sm:$0xf]
    %v227 = vld [vmem:[#allocation8 + $0x4] sm:$0xf]
    %v228 = vld [vmem:[#allocation8 + $0x8] sm:$0xf]
    %v229 = vld [vmem:[#allocation8 + $0xc] sm:$0xf]
    %v230 = vld [vmem:[#allocation8 + $0x10] sm:$0xf]
    %v231 = vld [vmem:[#allocation8 + $0x14] sm:$0xf]
    %v232 = vld [vmem:[#allocation8 + $0x18] sm:$0xf]
    %v233 = vld [vmem:[#allocation8 + $0x1c] sm:$0xf]
    %v234 = vld [vmem:[%s5] sm:$0x1]
    %v236 = vlaneseq
    %v237 = vshrl.u32 %v236, 7
    %v238 = vsub.s32 0, %v237
    %v239 = vrot.slane %v234, %v238
    %v249 = vunpack.c.l.b16 %v226
    %v250 = vunpack.c.l.b16 %v227
    %v251 = vunpack.c.l.b16 %v228
    %v252 = vunpack.c.l.b16 %v229
    %v253 = vunpack.c.l.b16 %v230
    %v254 = vunpack.c.l.b16 %v231
    %v255 = vunpack.c.l.b16 %v232
    %v256 = vunpack.c.l.b16 %v233
    %v257 = vpack.c.b16 %v250, %v249
    %v258 = vpack.c.b16 %v252, %v251
    %v259 = vpack.c.b16 %v254, %v253
    %v260 = vpack.c.b16 %v256, %v255
    %vm265 = vcmask 523264
    %v267 = vsel %vm265, %v225, 0
    %269 = vmatprep.subr.bf16.mxu0 0
    %270 = vmatpush1.bf16.msra.mxu0 0
    %271 = vmatprep.subr.bf16.mxu0 0
    %272 = vmatpush1.bf16.msra.mxu0 0
    %273 = vmatprep.subr.bf16.mxu0 0
    %274 = vmatpush1.bf16.msra.mxu0 0
    %275 = vmatprep.subr.bf16.mxu0 0
    %276 = vmatpush1.bf16.msra.mxu0 0
    %277 = vmatprep.subr.bf16.mxu0 0
    %278 = vmatpush1.bf16.msra.mxu0 %v260
    %279 = vmatprep.subr.bf16.mxu0 0
    %280 = vmatpush1.bf16.msra.mxu0 %v259
    %281 = vmatprep.subr.bf16.mxu0 0
    %282 = vmatpush1.bf16.msra.mxu0 %v258
    %283 = vmatprep.subr.bf16.mxu0 0
    %284 = vmatpush1.bf16.msra.mxu0 %v257
    %285 = vmatprep.subr.bf16.mxu0 0
    %286 = vmatpush2.bf16.msra.mxu0 0
    %287 = vmatprep.subr.bf16.mxu0 0
    %288 = vmatpush2.bf16.msra.mxu0 0
    %289 = vmatprep.subr.bf16.mxu0 0
    %290 = vmatpush2.bf16.msra.mxu0 0
    %291 = vmatprep.subr.bf16.mxu0 0
    %292 = vmatpush2.bf16.msra.mxu0 0
    %293 = vmatprep.subr.bf16.mxu0 0
    %294 = vmatpush2.bf16.msra.mxu0 0
    %295 = vmatprep.subr.bf16.mxu0 0
    %296 = vmatpush2.bf16.msra.mxu0 0
    %297 = vmatprep.subr.bf16.mxu0 0
    %298 = vmatpush2.bf16.msra.mxu0 0
    %299 = vmatprep.subr.bf16.mxu0 0
    %300 = vmatpush2.bf16.msra.mxu0 0
    %301 = vmatprep.mubr.bf16.mxu0 0
    %302 = vmatmul.mubr.bf16.gmra.mxu0 %v267
    %v303 = vpop.f32.mrf.mxu0
    %v304 = vadd.f32 %v239, %v303
    %v305 = vpop.f32.mrf.mxu0
    %v306 = vpop.f32.mrf.mxu0
    %v307 = vpop.f32.mrf.mxu0
    %308 = vdwg.mxu0
    %vm309 = vcmp.lt.s32.totalorder %v217, 16
    %v310 = vmul.f32 %v304, 0.5
    %v311 = vtanh.pop %v310
    %v312 = vmul.f32 %v311, 0.5
    %v313 = vadd.f32 %v312, 0.5
    %v314 = vmax.f32 %v304, 0.0
    %v315 = vsel %vm309, %v313, %v314
    %316 = vst [vmem:[#allocation16] sm:$0xff] %v315
    %v317 = vld [vmem:[#allocation5] sm:$0xff]
    %v318 = vpack.c.bf16 %v317, %v317
    %v319 = vld [vmem:[#allocation10] sm:$0xf]
    %v320 = vld [vmem:[#allocation10 + $0x4] sm:$0xf]
    %v321 = vld [vmem:[#allocation10 + $0x8] sm:$0xf]
    %v322 = vld [vmem:[#allocation11] sm:$0x1]
    %v324 = vlaneseq
    %v325 = vshrl.u32 %v324, 7
    %v326 = vsub.s32 0, %v325
    %v327 = vrot.slane %v322, %v326
    %v332 = vunpack.c.l.b16 %v319
    %v333 = vunpack.c.l.b16 %v320
    %v334 = vunpack.c.l.b16 %v321
    %v335 = vpack.c.b16 %v333, %v332
    %v336 = vpack.c.b16 %v334, %v334
    %vm338 = vcmask 195584
    %v340 = vsel %vm338, %v318, 0
    %vm342 = vcmask 1043456
    %v344 = vsel %vm342, %v336, 0
    %346 = vmatprep.subr.bf16.mxu0 0
    %347 = vmatpush1.bf16.msra.mxu0 0
    %348 = vmatprep.subr.bf16.mxu0 0
    %349 = vmatpush1.bf16.msra.mxu0 0
    %350 = vmatprep.subr.bf16.mxu0 0
    %351 = vmatpush1.bf16.msra.mxu0 0
    %352 = vmatprep.subr.bf16.mxu0 0
    %353 = vmatpush1.bf16.msra.mxu0 0
    %354 = vmatprep.subr.bf16.mxu0 0
    %355 = vmatpush1.bf16.msra.mxu0 0
    %356 = vmatprep.subr.bf16.mxu0 0
    %357 = vmatpush1.bf16.msra.mxu0 0
    %358 = vmatprep.subr.bf16.mxu0 0
    %359 = vmatpush1.bf16.msra.mxu0 %v344
    %360 = vmatprep.subr.bf16.mxu0 0
    %361 = vmatpush1.bf16.msra.mxu0 %v335
    %362 = vmatprep.subr.bf16.mxu0 0
    %363 = vmatpush2.bf16.msra.mxu0 0
    %364 = vmatprep.subr.bf16.mxu0 0
    %365 = vmatpush2.bf16.msra.mxu0 0
    %366 = vmatprep.subr.bf16.mxu0 0
    %367 = vmatpush2.bf16.msra.mxu0 0
    %368 = vmatprep.subr.bf16.mxu0 0
    %369 = vmatpush2.bf16.msra.mxu0 0
    %370 = vmatprep.subr.bf16.mxu0 0
    %371 = vmatpush2.bf16.msra.mxu0 0
    %372 = vmatprep.subr.bf16.mxu0 0
    %373 = vmatpush2.bf16.msra.mxu0 0
    %374 = vmatprep.subr.bf16.mxu0 0
    %375 = vmatpush2.bf16.msra.mxu0 0
    %376 = vmatprep.subr.bf16.mxu0 0
    %377 = vmatpush2.bf16.msra.mxu0 0
    %378 = vmatprep.mubr.bf16.mxu0 0
    %379 = vmatmul.mubr.bf16.gmra.mxu0 %v340
    %v380 = vpop.f32.mrf.mxu0
    %v381 = vadd.f32 %v327, %v380
    %v382 = vpop.f32.mrf.mxu0
    %v383 = vpop.f32.mrf.mxu0
    %v384 = vpop.f32.mrf.mxu0
    %385 = vdwg.mxu0
    %v386 = vmul.f32 %v381, 0.5
    %v387 = vtanh.pop %v386
    %v388 = vmul.f32 %v387, 0.5
    %v389 = vadd.f32 %v388, 0.5
    %v390 = vpack.c.bf16 %v389, %v389
    %v391 = vld [vmem:[#allocation13] sm:$0xf]
    %v392 = vld [vmem:[#allocation13 + $0x4] sm:$0xf]
    %v393 = vld [vmem:[#allocation13 + $0x8] sm:$0xf]
    %v394 = vld [vmem:[#allocation13 + $0xc] sm:$0xf]
    %v395 = vld [vmem:[#allocation14] sm:$0x1]
    %v397 = vlaneseq
    %v398 = vshrl.u32 %v397, 7
    %v399 = vsub.s32 0, %v398
    %v400 = vrot.slane %v395, %v399
    %v406 = vunpack.c.l.b16 %v391
    %v407 = vunpack.c.l.b16 %v392
    %v408 = vunpack.c.l.b16 %v393
    %v409 = vunpack.c.l.b16 %v394
    %v410 = vpack.c.b16 %v407, %v406
    %v411 = vpack.c.b16 %v409, %v408
    %v415 = vsel %vm172, %v390, 0
    %417 = vmatprep.subr.bf16.mxu0 0
    %418 = vmatpush1.bf16.msra.mxu0 0
    %419 = vmatprep.subr.bf16.mxu0 0
    %420 = vmatpush1.bf16.msra.mxu0 0
    %421 = vmatprep.subr.bf16.mxu0 0
    %422 = vmatpush1.bf16.msra.mxu0 0
    %423 = vmatprep.subr.bf16.mxu0 0
    %424 = vmatpush1.bf16.msra.mxu0 0
    %425 = vmatprep.subr.bf16.mxu0 0
    %426 = vmatpush1.bf16.msra.mxu0 0
    %427 = vmatprep.subr.bf16.mxu0 0
    %428 = vmatpush1.bf16.msra.mxu0 0
    %429 = vmatprep.subr.bf16.mxu0 0
    %430 = vmatpush1.bf16.msra.mxu0 %v411
    %431 = vmatprep.subr.bf16.mxu0 0
    %432 = vmatpush1.bf16.msra.mxu0 %v410
    %433 = vmatprep.subr.bf16.mxu0 0
    %434 = vmatpush2.bf16.msra.mxu0 0
    %435 = vmatprep.subr.bf16.mxu0 0
    %436 = vmatpush2.bf16.msra.mxu0 0
    %437 = vmatprep.subr.bf16.mxu0 0
    %438 = vmatpush2.bf16.msra.mxu0 0
    %439 = vmatprep.subr.bf16.mxu0 0
    %440 = vmatpush2.bf16.msra.mxu0 0
    %441 = vmatprep.subr.bf16.mxu0 0
    %442 = vmatpush2.bf16.msra.mxu0 0
    %443 = vmatprep.subr.bf16.mxu0 0
    %444 = vmatpush2.bf16.msra.mxu0 0
    %445 = vmatprep.subr.bf16.mxu0 0
    %446 = vmatpush2.bf16.msra.mxu0 0
    %447 = vmatprep.subr.bf16.mxu0 0
    %448 = vmatpush2.bf16.msra.mxu0 0
    %449 = vmatprep.mubr.bf16.mxu0 0
    %450 = vmatmul.mubr.bf16.gmra.mxu0 %v415
    %v451 = vpop.f32.mrf.mxu0
    %v452 = vadd.f32 %v400, %v451
    %v453 = vpop.f32.mrf.mxu0
    %v454 = vpop.f32.mrf.mxu0
    %v455 = vpop.f32.mrf.mxu0
    %456 = vdwg.mxu0
    %v457 = vmul.f32 %v452, 0.5
    %v458 = vtanh.pop %v457
    %v459 = vmul.f32 %v458, 0.5
    %v460 = vadd.f32 %v459, 0.5
    %v461 = vpack.c.bf16 %v460, %v460
    %v462 = vld [vmem:[%s10] sm:$0xf]
    %v463 = vld [vmem:[%s10 + $0x4] sm:$0xf]
    %v464 = vld [vmem:[%s10 + $0x8] sm:$0xf]
    %v465 = vld [vmem:[%s10 + $0xc] sm:$0xf]
    %v466 = vld [vmem:[%s11] sm:$0x1]
    %v468 = vlaneseq
    %v469 = vshrl.u32 %v468, 7
    %v470 = vsub.s32 0, %v469
    %v471 = vrot.slane %v466, %v470
    %v477 = vunpack.c.l.b16 %v462
    %v478 = vunpack.c.l.b16 %v463
    %v479 = vunpack.c.l.b16 %v464
    %v480 = vunpack.c.l.b16 %v465
    %v481 = vpack.c.b16 %v478, %v477
    %v482 = vpack.c.b16 %v480, %v479
    %v486 = vsel %vm172, %v461, 0
    %488 = vmatprep.subr.bf16.mxu0 0
    %489 = vmatpush1.bf16.msra.mxu0 0
    %490 = vmatprep.subr.bf16.mxu0 0
    %491 = vmatpush1.bf16.msra.mxu0 0
    %492 = vmatprep.subr.bf16.mxu0 0
    %493 = vmatpush1.bf16.msra.mxu0 0
    %494 = vmatprep.subr.bf16.mxu0 0
    %495 = vmatpush1.bf16.msra.mxu0 0
    %496 = vmatprep.subr.bf16.mxu0 0
    %497 = vmatpush1.bf16.msra.mxu0 0
    %498 = vmatprep.subr.bf16.mxu0 0
    %499 = vmatpush1.bf16.msra.mxu0 0
    %500 = vmatprep.subr.bf16.mxu0 0
    %501 = vmatpush1.bf16.msra.mxu0 %v482
    %502 = vmatprep.subr.bf16.mxu0 0
    %503 = vmatpush1.bf16.msra.mxu0 %v481
    %504 = vmatprep.subr.bf16.mxu0 0
    %505 = vmatpush2.bf16.msra.mxu0 0
    %506 = vmatprep.subr.bf16.mxu0 0
    %507 = vmatpush2.bf16.msra.mxu0 0
    %508 = vmatprep.subr.bf16.mxu0 0
    %509 = vmatpush2.bf16.msra.mxu0 0
    %510 = vmatprep.subr.bf16.mxu0 0
    %511 = vmatpush2.bf16.msra.mxu0 0
    %512 = vmatprep.subr.bf16.mxu0 0
    %513 = vmatpush2.bf16.msra.mxu0 0
    %514 = vmatprep.subr.bf16.mxu0 0
    %515 = vmatpush2.bf16.msra.mxu0 0
    %516 = vmatprep.subr.bf16.mxu0 0
    %517 = vmatpush2.bf16.msra.mxu0 0
    %518 = vmatprep.subr.bf16.mxu0 0
    %519 = vmatpush2.bf16.msra.mxu0 0
    %520 = vmatprep.mubr.bf16.mxu0 0
    %521 = vmatmul.mubr.bf16.gmra.mxu0 %v486
    %v522 = vpop.f32.mrf.mxu0
    %v523 = vadd.f32 %v471, %v522
    %v524 = vpop.f32.mrf.mxu0
    %v525 = vpop.f32.mrf.mxu0
    %v526 = vpop.f32.mrf.mxu0
    %527 = vdwg.mxu0
    %v528 = vmul.f32 %v523, 0.5
    %v529 = vtanh.pop %v528
    %v530 = vmul.f32 %v529, 0.5
    %v531 = vadd.f32 %v530, 0.5
    %532 = vst [vmem:[#allocation17] sm:$0xff] %v531
    // Predicated region
    $region82: #{tpu_custom_call.1} parent=1 // pred_check
      _
    $region83: #{tpu_custom_call.1} parent=1 // pred_check_branch
      %534 = sbr.rel (0) target = $region85
    $region84: #{tpu_custom_call.1} parent=1 // pred_region
      %s536 = ssub.s32 128, 128
      %537 = vsyncadd [#allocation4], %s536
      %s539 = sshll.u32 [#allocation16], 4
      %s540 = int_to_ptr.vmem [resolvable:$true] %s539
      %542 = dma.vmem_to_hbm [thread:$0]  %s540, 128, %s12, [#allocation4]
    $region85: #{tpu_custom_call.1} parent=1 // pred_fallthru
      _
    // Predicated region
    $region86: #{tpu_custom_call.1} parent=1 // pred_check
      _
    $region87: #{tpu_custom_call.1} parent=1 // pred_check_branch
      %544 = sbr.rel (0) target = $region89
    $region88: #{tpu_custom_call.1} parent=1 // pred_region
      %s546 = ssub.s32 128, 128
      %547 = vsyncadd [#allocation18], %s546
      %s549 = sshll.u32 [#allocation17], 4
      %s550 = int_to_ptr.vmem [resolvable:$true] %s549
      %552 = dma.vmem_to_hbm [thread:$0]  %s550, 128, %s13, [#allocation18]
    $region89: #{tpu_custom_call.1} parent=1 // pred_fallthru
      _
    // Predicated region
    $region90: #{tpu_custom_call.1} parent=1 // pred_check
      _
    $region91: #{tpu_custom_call.1} parent=1 // pred_check_branch
      %554 = sbr.rel (0) target = $region93
    $region92: #{tpu_custom_call.1} parent=1 // pred_region
      %555 = dma.done [#allocation4], 128
    $region93: #{tpu_custom_call.1} parent=1 // pred_fallthru
      _
    // Predicated region
    $region94: #{tpu_custom_call.1} parent=1 // pred_check
      _
    $region95: #{tpu_custom_call.1} parent=1 // pred_check_branch
      %557 = sbr.rel (0) target = $region97
    $region96: #{tpu_custom_call.1} parent=1 // pred_region
      %558 = dma.done [#allocation18], 128
    $region97: #{tpu_custom_call.1} parent=1 // pred_fallthru
      _
    %559 = vsyncpa [#allocation3], 1
    %560 = vsyncpa [#allocation6], 1
    %561 = vsyncpa [#allocation9], 1
    %562 = vsyncpa [#allocation12], 1
    %563 = vsyncpa [#allocation15], 1
    %564 = vsyncpa [#allocation4], 1
    %565 = vsyncpa [#allocation18], 1

</llo_original>
